<compile_context>
chip_gen: v6e
topology: v6e:2x2x1
jax: 0.10.0
libtpu: 0.0.40
codegen_flags: <defaults>
</compile_context>

<pallas_src>
import math

import jax
import jax.numpy as jnp
from jax import lax
from jax.experimental import pallas as pl
from jax.experimental.pallas import tpu as pltpu


def _lstm_recurrence_kernel(p_ref, whh_ref, o_ref):
    """Full LSTM recurrence in one kernel invocation.

    p_ref  : (B, T, 4H) f32  precomputed x @ W_ih^T + (b_ih + b_hh), VMEM resident
    whh_ref: (H, 4H)         hidden->gates weights (already transposed), VMEM resident
    o_ref  : (B, T, H)       per-step hidden states; single HBM writeback at the end
    """
    B, T, _ = p_ref.shape
    H = whh_ref.shape[0]

    whh = whh_ref[...]                      # load once, reused every step

    # h/c state carried as values (f32) — no scratch, no per-step init gating.
    h = jnp.zeros((B, H), jnp.float32)
    c = jnp.zeros((B, H), jnp.float32)

    # Serial recurrence.  T is a small static trip count, so a fully unrolled
    # Python loop gives the scheduler full visibility; the only MXU work on the
    # critical path is the (B, H) @ (H, 4H) recurrent matmul per step.
    for t in range(T):
        gates = p_ref[:, t, :] + jnp.dot(
            h, whh, preferred_element_type=jnp.float32)         # (B, 4H)

        # Gate math stays in f32 (v5e has no bf16 VPU/EUP; f32 matches PyTorch).
        i_g = jax.nn.sigmoid(gates[:, 0 * H:1 * H])
        f_g = jax.nn.sigmoid(gates[:, 1 * H:2 * H])
        g_g = jnp.tanh(gates[:, 2 * H:3 * H])
        o_g = jax.nn.sigmoid(gates[:, 3 * H:4 * H])

        c = f_g * c + i_g * g_g
        h = o_g * jnp.tanh(c)

        o_ref[:, t, :] = h.astype(o_ref.dtype)   # VMEM store; HBM writeback once


def lstm_forward(x, w_ih, w_hh, b_ih, b_hh):
    """x: (B, T, I) batch_first.  Returns (B, T, H), matching nn.LSTM output[0]."""
    B, T, I = x.shape
    H = w_hh.shape[1]

    # Hoist the input projection (and the combined bias) out of the serial chain:
    # one (B*T, I) x (I, 4H)-shaped batched matmul for all time steps, batch-first
    # layout preserved (no activation transposes anywhere).
    bias = b_ih + b_hh                                              # (4H,)
    p = jnp.einsum('bti,gi->btg', x, w_ih,
                   preferred_element_type=jnp.float32) + bias       # (B, T, 4H)
    p = p.astype(jnp.float32)

    whh_t = jnp.transpose(w_hh, (1, 0))                             # (H, 4H), tiny

    # NOTE for real sizes: cast p / whh_t to bf16 as MXU operands on v6e/v7x (keep
    # gate math and c/h in f32), tile the 4H gate-column axis if (H, 4H) cannot stay
    # VMEM-resident (v7x has 64 MiB), and add a 'parallel' batch grid axis so v7x's
    # second TensorCore runs independent sequences.  Not needed at this toy size.
    return pl.pallas_call(
        _lstm_recurrence_kernel,
        out_shape=jax.ShapeDtypeStruct((B, T, H), x.dtype),
        in_specs=[
            pl.BlockSpec(memory_space=pltpu.MemorySpace.VMEM),      # P (resident)
            pl.BlockSpec(memory_space=pltpu.MemorySpace.VMEM),      # W_hh^T (resident)
        ],
        out_specs=pl.BlockSpec(memory_space=pltpu.MemorySpace.VMEM),
    )(p, whh_t)


def lstm_reference(x, w_ih, w_hh, b_ih, b_hh):
    """Pure-JAX reference of nn.LSTM(batch_first=True) forward (1 layer, unidir)."""
    B, T, I = x.shape
    H = w_hh.shape[1]

    def step(carry, x_t):
        h, c = carry
        gates = x_t @ w_ih.T + b_ih + h @ w_hh.T + b_hh
        i = jax.nn.sigmoid(gates[:, 0 * H:1 * H])
        f = jax.nn.sigmoid(gates[:, 1 * H:2 * H])
        g = jnp.tanh(gates[:, 2 * H:3 * H])
        o = jax.nn.sigmoid(gates[:, 3 * H:4 * H])
        c_new = f * c + i * g
        h_new = o * jnp.tanh(c_new)
        return (h_new, c_new), h_new

    h0 = jnp.zeros((B, H), x.dtype)
    c0 = jnp.zeros((B, H), x.dtype)
    _, ys = lax.scan(step, (h0, c0), jnp.transpose(x, (1, 0, 2)))
    return jnp.transpose(ys, (1, 0, 2))


if __name__ == "__main__":
    # Module config: Lstm(input_size=32, hidden_size=32, num_layers=1, bidirectional=False)
    B, T, I, H = 2, 8, 32, 32

    key = jax.random.PRNGKey(0)
    kx, k1, k2, k3, k4 = jax.random.split(key, 5)

    # PyTorch nn.LSTM default init: U(-1/sqrt(H), 1/sqrt(H)) for all params.
    bound = 1.0 / math.sqrt(H)
    w_ih = jax.random.uniform(k1, (4 * H, I), jnp.float32, -bound, bound)
    w_hh = jax.random.uniform(k2, (4 * H, H), jnp.float32, -bound, bound)
    b_ih = jax.random.uniform(k3, (4 * H,), jnp.float32, -bound, bound)
    b_hh = jax.random.uniform(k4, (4 * H,), jnp.float32, -bound, bound)

    x = jax.random.normal(kx, (B, T, I), jnp.float32)

    out = lstm_forward(x, w_ih, w_hh, b_ih, b_hh)
    out = jax.block_until_ready(out)

    ref = lstm_reference(x, w_ih, w_hh, b_ih, b_hh)
    assert out.shape == (B, T, H)
    assert jnp.allclose(out, ref, atol=1e-5, rtol=1e-5), "Pallas LSTM mismatch vs reference"

    print("KERNEL_OK")
</pallas_src>

<mosaic_0001>
module attributes {stable_mosaic.version = 11 : i64} {
  func.func @_lstm_recurrence_kernel(%arg0: memref<2x8x128xf32, #tpu.memory_space<vmem>>, %arg1: memref<32x128xf32, #tpu.memory_space<vmem>>, %arg2: memref<2x8x32xf32, #tpu.memory_space<vmem>>) attributes {dimension_semantics = [], scalar_prefetch = 0 : i64, scratch_operands = 0 : i64, tpu.core_type = #tpu.core_type<tc>} {
    %c0 = arith.constant 0 : index
    %c0_0 = arith.constant 0 : index
    %0 = vector.load %arg1[%c0, %c0_0] : memref<32x128xf32, #tpu.memory_space<vmem>>, vector<32x128xf32>
    %cst = arith.constant 0.000000e+00 : f32
    %1 = vector.broadcast %cst : f32 to vector<2x32xf32>
    %cst_1 = arith.constant 0.000000e+00 : f32
    %2 = vector.broadcast %cst_1 : f32 to vector<2x32xf32>
    %c0_2 = arith.constant 0 : index
    %c0_3 = arith.constant 0 : index
    %c0_4 = arith.constant 0 : index
    %3 = vector.load %arg0[%c0_2, %c0_3, %c0_4] : memref<2x8x128xf32, #tpu.memory_space<vmem>>, vector<2x1x128xf32>
    %4 = vector.shape_cast %3 : vector<2x1x128xf32> to vector<2x128xf32>
    %cst_5 = arith.constant dense<0.000000e+00> : vector<2x128xf32>
    %5 = tpu.matmul %1, %0, %cst_5 {dimension_numbers = #tpu.dot_dimension_numbers<[1], [0], [0], [1], [0, 0, 1, 1], [], []>} : vector<2x32xf32>, vector<32x128xf32>, vector<2x128xf32> -> vector<2x128xf32>
    %6 = arith.addf %4, %5 : vector<2x128xf32>
    %7 = vector.extract_strided_slice %6 {offsets = [0, 0], sizes = [2, 32], strides = [1, 1]} : vector<2x128xf32> to vector<2x32xf32>
    %8 = arith.negf %7 : vector<2x32xf32>
    %9 = math.exp %8 : vector<2x32xf32>
    %cst_6 = arith.constant 1.000000e+00 : f32
    %10 = vector.broadcast %cst_6 : f32 to vector<2x32xf32>
    %11 = arith.addf %10, %9 : vector<2x32xf32>
    %12 = arith.divf %10, %11 : vector<2x32xf32>
    %13 = vector.extract_strided_slice %6 {offsets = [0, 32], sizes = [2, 32], strides = [1, 1]} : vector<2x128xf32> to vector<2x32xf32>
    %14 = arith.negf %13 : vector<2x32xf32>
    %15 = math.exp %14 : vector<2x32xf32>
    %cst_7 = arith.constant 1.000000e+00 : f32
    %16 = vector.broadcast %cst_7 : f32 to vector<2x32xf32>
    %17 = arith.addf %16, %15 : vector<2x32xf32>
    %18 = arith.divf %16, %17 : vector<2x32xf32>
    %19 = vector.extract_strided_slice %6 {offsets = [0, 64], sizes = [2, 32], strides = [1, 1]} : vector<2x128xf32> to vector<2x32xf32>
    %20 = math.tanh %19 : vector<2x32xf32>
    %21 = vector.extract_strided_slice %6 {offsets = [0, 96], sizes = [2, 32], strides = [1, 1]} : vector<2x128xf32> to vector<2x32xf32>
    %22 = arith.negf %21 : vector<2x32xf32>
    %23 = math.exp %22 : vector<2x32xf32>
    %cst_8 = arith.constant 1.000000e+00 : f32
    %24 = vector.broadcast %cst_8 : f32 to vector<2x32xf32>
    %25 = arith.addf %24, %23 : vector<2x32xf32>
    %26 = arith.divf %24, %25 : vector<2x32xf32>
    %27 = arith.mulf %18, %2 : vector<2x32xf32>
    %28 = arith.mulf %12, %20 : vector<2x32xf32>
    %29 = arith.addf %27, %28 : vector<2x32xf32>
    %30 = math.tanh %29 : vector<2x32xf32>
    %31 = arith.mulf %26, %30 : vector<2x32xf32>
    %c0_9 = arith.constant 0 : index
    %c0_10 = arith.constant 0 : index
    %c0_11 = arith.constant 0 : index
    %32 = vector.load %arg2[%c0_9, %c0_10, %c0_11] : memref<2x8x32xf32, #tpu.memory_space<vmem>>, vector<2x1x32xf32>
    %33 = vector.shape_cast %32 : vector<2x1x32xf32> to vector<2x32xf32>
    %34 = vector.shape_cast %31 : vector<2x32xf32> to vector<2x1x32xf32>
    tpu.vector_store %arg2[%c0_9, %c0_10, %c0_11], %34 {strides = array<i32>} : memref<2x8x32xf32, #tpu.memory_space<vmem>>, vector<2x1x32xf32>,
    %c0_12 = arith.constant 0 : index
    %c1 = arith.constant 1 : index
    %c0_13 = arith.constant 0 : index
    %35 = vector.load %arg0[%c0_12, %c1, %c0_13] : memref<2x8x128xf32, #tpu.memory_space<vmem>>, vector<2x1x128xf32>
    %36 = vector.shape_cast %35 : vector<2x1x128xf32> to vector<2x128xf32>
    %cst_14 = arith.constant dense<0.000000e+00> : vector<2x128xf32>
    %37 = tpu.matmul %31, %0, %cst_14 {dimension_numbers = #tpu.dot_dimension_numbers<[1], [0], [0], [1], [0, 0, 1, 1], [], []>} : vector<2x32xf32>, vector<32x128xf32>, vector<2x128xf32> -> vector<2x128xf32>
    %38 = arith.addf %36, %37 : vector<2x128xf32>
    %39 = vector.extract_strided_slice %38 {offsets = [0, 0], sizes = [2, 32], strides = [1, 1]} : vector<2x128xf32> to vector<2x32xf32>
    %40 = arith.negf %39 : vector<2x32xf32>
    %41 = math.exp %40 : vector<2x32xf32>
    %cst_15 = arith.constant 1.000000e+00 : f32
    %42 = vector.broadcast %cst_15 : f32 to vector<2x32xf32>
    %43 = arith.addf %42, %41 : vector<2x32xf32>
    %44 = arith.divf %42, %43 : vector<2x32xf32>
    %45 = vector.extract_strided_slice %38 {offsets = [0, 32], sizes = [2, 32], strides = [1, 1]} : vector<2x128xf32> to vector<2x32xf32>
    %46 = arith.negf %45 : vector<2x32xf32>
    %47 = math.exp %46 : vector<2x32xf32>
    %cst_16 = arith.constant 1.000000e+00 : f32
    %48 = vector.broadcast %cst_16 : f32 to vector<2x32xf32>
    %49 = arith.addf %48, %47 : vector<2x32xf32>
    %50 = arith.divf %48, %49 : vector<2x32xf32>
    %51 = vector.extract_strided_slice %38 {offsets = [0, 64], sizes = [2, 32], strides = [1, 1]} : vector<2x128xf32> to vector<2x32xf32>
    %52 = math.tanh %51 : vector<2x32xf32>
    %53 = vector.extract_strided_slice %38 {offsets = [0, 96], sizes = [2, 32], strides = [1, 1]} : vector<2x128xf32> to vector<2x32xf32>
    %54 = arith.negf %53 : vector<2x32xf32>
    %55 = math.exp %54 : vector<2x32xf32>
    %cst_17 = arith.constant 1.000000e+00 : f32
    %56 = vector.broadcast %cst_17 : f32 to vector<2x32xf32>
    %57 = arith.addf %56, %55 : vector<2x32xf32>
    %58 = arith.divf %56, %57 : vector<2x32xf32>
    %59 = arith.mulf %50, %29 : vector<2x32xf32>
    %60 = arith.mulf %44, %52 : vector<2x32xf32>
    %61 = arith.addf %59, %60 : vector<2x32xf32>
    %62 = math.tanh %61 : vector<2x32xf32>
    %63 = arith.mulf %58, %62 : vector<2x32xf32>
    %c0_18 = arith.constant 0 : index
    %c1_19 = arith.constant 1 : index
    %c0_20 = arith.constant 0 : index
    %64 = vector.load %arg2[%c0_18, %c1_19, %c0_20] : memref<2x8x32xf32, #tpu.memory_space<vmem>>, vector<2x1x32xf32>
    %65 = vector.shape_cast %64 : vector<2x1x32xf32> to vector<2x32xf32>
    %66 = vector.shape_cast %63 : vector<2x32xf32> to vector<2x1x32xf32>
    tpu.vector_store %arg2[%c0_18, %c1_19, %c0_20], %66 {strides = array<i32>} : memref<2x8x32xf32, #tpu.memory_space<vmem>>, vector<2x1x32xf32>,
    %c0_21 = arith.constant 0 : index
    %c2 = arith.constant 2 : index
    %c0_22 = arith.constant 0 : index
    %67 = vector.load %arg0[%c0_21, %c2, %c0_22] : memref<2x8x128xf32, #tpu.memory_space<vmem>>, vector<2x1x128xf32>
    %68 = vector.shape_cast %67 : vector<2x1x128xf32> to vector<2x128xf32>
    %cst_23 = arith.constant dense<0.000000e+00> : vector<2x128xf32>
    %69 = tpu.matmul %63, %0, %cst_23 {dimension_numbers = #tpu.dot_dimension_numbers<[1], [0], [0], [1], [0, 0, 1, 1], [], []>} : vector<2x32xf32>, vector<32x128xf32>, vector<2x128xf32> -> vector<2x128xf32>
    %70 = arith.addf %68, %69 : vector<2x128xf32>
    %71 = vector.extract_strided_slice %70 {offsets = [0, 0], sizes = [2, 32], strides = [1, 1]} : vector<2x128xf32> to vector<2x32xf32>
    %72 = arith.negf %71 : vector<2x32xf32>
    %73 = math.exp %72 : vector<2x32xf32>
    %cst_24 = arith.constant 1.000000e+00 : f32
    %74 = vector.broadcast %cst_24 : f32 to vector<2x32xf32>
    %75 = arith.addf %74, %73 : vector<2x32xf32>
    %76 = arith.divf %74, %75 : vector<2x32xf32>
    %77 = vector.extract_strided_slice %70 {offsets = [0, 32], sizes = [2, 32], strides = [1, 1]} : vector<2x128xf32> to vector<2x32xf32>
    %78 = arith.negf %77 : vector<2x32xf32>
    %79 = math.exp %78 : vector<2x32xf32>
    %cst_25 = arith.constant 1.000000e+00 : f32
    %80 = vector.broadcast %cst_25 : f32 to vector<2x32xf32>
    %81 = arith.addf %80, %79 : vector<2x32xf32>
    %82 = arith.divf %80, %81 : vector<2x32xf32>
    %83 = vector.extract_strided_slice %70 {offsets = [0, 64], sizes = [2, 32], strides = [1, 1]} : vector<2x128xf32> to vector<2x32xf32>
    %84 = math.tanh %83 : vector<2x32xf32>
    %85 = vector.extract_strided_slice %70 {offsets = [0, 96], sizes = [2, 32], strides = [1, 1]} : vector<2x128xf32> to vector<2x32xf32>
    %86 = arith.negf %85 : vector<2x32xf32>
    %87 = math.exp %86 : vector<2x32xf32>
    %cst_26 = arith.constant 1.000000e+00 : f32
    %88 = vector.broadcast %cst_26 : f32 to vector<2x32xf32>
    %89 = arith.addf %88, %87 : vector<2x32xf32>
    %90 = arith.divf %88, %89 : vector<2x32xf32>
    %91 = arith.mulf %82, %61 : vector<2x32xf32>
    %92 = arith.mulf %76, %84 : vector<2x32xf32>
    %93 = arith.addf %91, %92 : vector<2x32xf32>
    %94 = math.tanh %93 : vector<2x32xf32>
    %95 = arith.mulf %90, %94 : vector<2x32xf32>
    %c0_27 = arith.constant 0 : index
    %c2_28 = arith.constant 2 : index
    %c0_29 = arith.constant 0 : index
    %96 = vector.load %arg2[%c0_27, %c2_28, %c0_29] : memref<2x8x32xf32, #tpu.memory_space<vmem>>, vector<2x1x32xf32>
    %97 = vector.shape_cast %96 : vector<2x1x32xf32> to vector<2x32xf32>
    %98 = vector.shape_cast %95 : vector<2x32xf32> to vector<2x1x32xf32>
    tpu.vector_store %arg2[%c0_27, %c2_28, %c0_29], %98 {strides = array<i32>} : memref<2x8x32xf32, #tpu.memory_space<vmem>>, vector<2x1x32xf32>,
    %c0_30 = arith.constant 0 : index
    %c3 = arith.constant 3 : index
    %c0_31 = arith.constant 0 : index
    %99 = vector.load %arg0[%c0_30, %c3, %c0_31] : memref<2x8x128xf32, #tpu.memory_space<vmem>>, vector<2x1x128xf32>
    %100 = vector.shape_cast %99 : vector<2x1x128xf32> to vector<2x128xf32>
    %cst_32 = arith.constant dense<0.000000e+00> : vector<2x128xf32>
    %101 = tpu.matmul %95, %0, %cst_32 {dimension_numbers = #tpu.dot_dimension_numbers<[1], [0], [0], [1], [0, 0, 1, 1], [], []>} : vector<2x32xf32>, vector<32x128xf32>, vector<2x128xf32> -> vector<2x128xf32>
    %102 = arith.addf %100, %101 : vector<2x128xf32>
    %103 = vector.extract_strided_slice %102 {offsets = [0, 0], sizes = [2, 32], strides = [1, 1]} : vector<2x128xf32> to vector<2x32xf32>
    %104 = arith.negf %103 : vector<2x32xf32>
    %105 = math.exp %104 : vector<2x32xf32>
    %cst_33 = arith.constant 1.000000e+00 : f32
    %106 = vector.broadcast %cst_33 : f32 to vector<2x32xf32>
    %107 = arith.addf %106, %105 : vector<2x32xf32>
    %108 = arith.divf %106, %107 : vector<2x32xf32>
    %109 = vector.extract_strided_slice %102 {offsets = [0, 32], sizes = [2, 32], strides = [1, 1]} : vector<2x128xf32> to vector<2x32xf32>
    %110 = arith.negf %109 : vector<2x32xf32>
    %111 = math.exp %110 : vector<2x32xf32>
    %cst_34 = arith.constant 1.000000e+00 : f32
    %112 = vector.broadcast %cst_34 : f32 to vector<2x32xf32>
    %113 = arith.addf %112, %111 : vector<2x32xf32>
    %114 = arith.divf %112, %113 : vector<2x32xf32>
    %115 = vector.extract_strided_slice %102 {offsets = [0, 64], sizes = [2, 32], strides = [1, 1]} : vector<2x128xf32> to vector<2x32xf32>
    %116 = math.tanh %115 : vector<2x32xf32>
    %117 = vector.extract_strided_slice %102 {offsets = [0, 96], sizes = [2, 32], strides = [1, 1]} : vector<2x128xf32> to vector<2x32xf32>
    %118 = arith.negf %117 : vector<2x32xf32>
    %119 = math.exp %118 : vector<2x32xf32>
    %cst_35 = arith.constant 1.000000e+00 : f32
    %120 = vector.broadcast %cst_35 : f32 to vector<2x32xf32>
    %121 = arith.addf %120, %119 : vector<2x32xf32>
    %122 = arith.divf %120, %121 : vector<2x32xf32>
    %123 = arith.mulf %114, %93 : vector<2x32xf32>
    %124 = arith.mulf %108, %116 : vector<2x32xf32>
    %125 = arith.addf %123, %124 : vector<2x32xf32>
    %126 = math.tanh %125 : vector<2x32xf32>
    %127 = arith.mulf %122, %126 : vector<2x32xf32>
    %c0_36 = arith.constant 0 : index
    %c3_37 = arith.constant 3 : index
    %c0_38 = arith.constant 0 : index
    %128 = vector.load %arg2[%c0_36, %c3_37, %c0_38] : memref<2x8x32xf32, #tpu.memory_space<vmem>>, vector<2x1x32xf32>
    %129 = vector.shape_cast %128 : vector<2x1x32xf32> to vector<2x32xf32>
    %130 = vector.shape_cast %127 : vector<2x32xf32> to vector<2x1x32xf32>
    tpu.vector_store %arg2[%c0_36, %c3_37, %c0_38], %130 {strides = array<i32>} : memref<2x8x32xf32, #tpu.memory_space<vmem>>, vector<2x1x32xf32>,
    %c0_39 = arith.constant 0 : index
    %c4 = arith.constant 4 : index
    %c0_40 = arith.constant 0 : index
    %131 = vector.load %arg0[%c0_39, %c4, %c0_40] : memref<2x8x128xf32, #tpu.memory_space<vmem>>, vector<2x1x128xf32>
    %132 = vector.shape_cast %131 : vector<2x1x128xf32> to vector<2x128xf32>
    %cst_41 = arith.constant dense<0.000000e+00> : vector<2x128xf32>
    %133 = tpu.matmul %127, %0, %cst_41 {dimension_numbers = #tpu.dot_dimension_numbers<[1], [0], [0], [1], [0, 0, 1, 1], [], []>} : vector<2x32xf32>, vector<32x128xf32>, vector<2x128xf32> -> vector<2x128xf32>
    %134 = arith.addf %132, %133 : vector<2x128xf32>
    %135 = vector.extract_strided_slice %134 {offsets = [0, 0], sizes = [2, 32], strides = [1, 1]} : vector<2x128xf32> to vector<2x32xf32>
    %136 = arith.negf %135 : vector<2x32xf32>
    %137 = math.exp %136 : vector<2x32xf32>
    %cst_42 = arith.constant 1.000000e+00 : f32
    %138 = vector.broadcast %cst_42 : f32 to vector<2x32xf32>
    %139 = arith.addf %138, %137 : vector<2x32xf32>
    %140 = arith.divf %138, %139 : vector<2x32xf32>
    %141 = vector.extract_strided_slice %134 {offsets = [0, 32], sizes = [2, 32], strides = [1, 1]} : vector<2x128xf32> to vector<2x32xf32>
    %142 = arith.negf %141 : vector<2x32xf32>
    %143 = math.exp %142 : vector<2x32xf32>
    %cst_43 = arith.constant 1.000000e+00 : f32
    %144 = vector.broadcast %cst_43 : f32 to vector<2x32xf32>
    %145 = arith.addf %144, %143 : vector<2x32xf32>
    %146 = arith.divf %144, %145 : vector<2x32xf32>
    %147 = vector.extract_strided_slice %134 {offsets = [0, 64], sizes = [2, 32], strides = [1, 1]} : vector<2x128xf32> to vector<2x32xf32>
    %148 = math.tanh %147 : vector<2x32xf32>
    %149 = vector.extract_strided_slice %134 {offsets = [0, 96], sizes = [2, 32], strides = [1, 1]} : vector<2x128xf32> to vector<2x32xf32>
    %150 = arith.negf %149 : vector<2x32xf32>
    %151 = math.exp %150 : vector<2x32xf32>
    %cst_44 = arith.constant 1.000000e+00 : f32
    %152 = vector.broadcast %cst_44 : f32 to vector<2x32xf32>
    %153 = arith.addf %152, %151 : vector<2x32xf32>
    %154 = arith.divf %152, %153 : vector<2x32xf32>
    %155 = arith.mulf %146, %125 : vector<2x32xf32>
    %156 = arith.mulf %140, %148 : vector<2x32xf32>
    %157 = arith.addf %155, %156 : vector<2x32xf32>
    %158 = math.tanh %157 : vector<2x32xf32>
    %159 = arith.mulf %154, %158 : vector<2x32xf32>
    %c0_45 = arith.constant 0 : index
    %c4_46 = arith.constant 4 : index
    %c0_47 = arith.constant 0 : index
    %160 = vector.load %arg2[%c0_45, %c4_46, %c0_47] : memref<2x8x32xf32, #tpu.memory_space<vmem>>, vector<2x1x32xf32>
    %161 = vector.shape_cast %160 : vector<2x1x32xf32> to vector<2x32xf32>
    %162 = vector.shape_cast %159 : vector<2x32xf32> to vector<2x1x32xf32>
    tpu.vector_store %arg2[%c0_45, %c4_46, %c0_47], %162 {strides = array<i32>} : memref<2x8x32xf32, #tpu.memory_space<vmem>>, vector<2x1x32xf32>,
    %c0_48 = arith.constant 0 : index
    %c5 = arith.constant 5 : index
    %c0_49 = arith.constant 0 : index
    %163 = vector.load %arg0[%c0_48, %c5, %c0_49] : memref<2x8x128xf32, #tpu.memory_space<vmem>>, vector<2x1x128xf32>
    %164 = vector.shape_cast %163 : vector<2x1x128xf32> to vector<2x128xf32>
    %cst_50 = arith.constant dense<0.000000e+00> : vector<2x128xf32>
    %165 = tpu.matmul %159, %0, %cst_50 {dimension_numbers = #tpu.dot_dimension_numbers<[1], [0], [0], [1], [0, 0, 1, 1], [], []>} : vector<2x32xf32>, vector<32x128xf32>, vector<2x128xf32> -> vector<2x128xf32>
    %166 = arith.addf %164, %165 : vector<2x128xf32>
    %167 = vector.extract_strided_slice %166 {offsets = [0, 0], sizes = [2, 32], strides = [1, 1]} : vector<2x128xf32> to vector<2x32xf32>
    %168 = arith.negf %167 : vector<2x32xf32>
    %169 = math.exp %168 : vector<2x32xf32>
    %cst_51 = arith.constant 1.000000e+00 : f32
    %170 = vector.broadcast %cst_51 : f32 to vector<2x32xf32>
    %171 = arith.addf %170, %169 : vector<2x32xf32>
    %172 = arith.divf %170, %171 : vector<2x32xf32>
    %173 = vector.extract_strided_slice %166 {offsets = [0, 32], sizes = [2, 32], strides = [1, 1]} : vector<2x128xf32> to vector<2x32xf32>
    %174 = arith.negf %173 : vector<2x32xf32>
    %175 = math.exp %174 : vector<2x32xf32>
    %cst_52 = arith.constant 1.000000e+00 : f32
    %176 = vector.broadcast %cst_52 : f32 to vector<2x32xf32>
    %177 = arith.addf %176, %175 : vector<2x32xf32>
    %178 = arith.divf %176, %177 : vector<2x32xf32>
    %179 = vector.extract_strided_slice %166 {offsets = [0, 64], sizes = [2, 32], strides = [1, 1]} : vector<2x128xf32> to vector<2x32xf32>
    %180 = math.tanh %179 : vector<2x32xf32>
    %181 = vector.extract_strided_slice %166 {offsets = [0, 96], sizes = [2, 32], strides = [1, 1]} : vector<2x128xf32> to vector<2x32xf32>
    %182 = arith.negf %181 : vector<2x32xf32>
    %183 = math.exp %182 : vector<2x32xf32>
    %cst_53 = arith.constant 1.000000e+00 : f32
    %184 = vector.broadcast %cst_53 : f32 to vector<2x32xf32>
    %185 = arith.addf %184, %183 : vector<2x32xf32>
    %186 = arith.divf %184, %185 : vector<2x32xf32>
    %187 = arith.mulf %178, %157 : vector<2x32xf32>
    %188 = arith.mulf %172, %180 : vector<2x32xf32>
    %189 = arith.addf %187, %188 : vector<2x32xf32>
    %190 = math.tanh %189 : vector<2x32xf32>
    %191 = arith.mulf %186, %190 : vector<2x32xf32>
    %c0_54 = arith.constant 0 : index
    %c5_55 = arith.constant 5 : index
    %c0_56 = arith.constant 0 : index
    %192 = vector.load %arg2[%c0_54, %c5_55, %c0_56] : memref<2x8x32xf32, #tpu.memory_space<vmem>>, vector<2x1x32xf32>
    %193 = vector.shape_cast %192 : vector<2x1x32xf32> to vector<2x32xf32>
    %194 = vector.shape_cast %191 : vector<2x32xf32> to vector<2x1x32xf32>
    tpu.vector_store %arg2[%c0_54, %c5_55, %c0_56], %194 {strides = array<i32>} : memref<2x8x32xf32, #tpu.memory_space<vmem>>, vector<2x1x32xf32>,
    %c0_57 = arith.constant 0 : index
    %c6 = arith.constant 6 : index
    %c0_58 = arith.constant 0 : index
    %195 = vector.load %arg0[%c0_57, %c6, %c0_58] : memref<2x8x128xf32, #tpu.memory_space<vmem>>, vector<2x1x128xf32>
    %196 = vector.shape_cast %195 : vector<2x1x128xf32> to vector<2x128xf32>
    %cst_59 = arith.constant dense<0.000000e+00> : vector<2x128xf32>
    %197 = tpu.matmul %191, %0, %cst_59 {dimension_numbers = #tpu.dot_dimension_numbers<[1], [0], [0], [1], [0, 0, 1, 1], [], []>} : vector<2x32xf32>, vector<32x128xf32>, vector<2x128xf32> -> vector<2x128xf32>
    %198 = arith.addf %196, %197 : vector<2x128xf32>
    %199 = vector.extract_strided_slice %198 {offsets = [0, 0], sizes = [2, 32], strides = [1, 1]} : vector<2x128xf32> to vector<2x32xf32>
    %200 = arith.negf %199 : vector<2x32xf32>
    %201 = math.exp %200 : vector<2x32xf32>
    %cst_60 = arith.constant 1.000000e+00 : f32
    %202 = vector.broadcast %cst_60 : f32 to vector<2x32xf32>
    %203 = arith.addf %202, %201 : vector<2x32xf32>
    %204 = arith.divf %202, %203 : vector<2x32xf32>
    %205 = vector.extract_strided_slice %198 {offsets = [0, 32], sizes = [2, 32], strides = [1, 1]} : vector<2x128xf32> to vector<2x32xf32>
    %206 = arith.negf %205 : vector<2x32xf32>
    %207 = math.exp %206 : vector<2x32xf32>
    %cst_61 = arith.constant 1.000000e+00 : f32
    %208 = vector.broadcast %cst_61 : f32 to vector<2x32xf32>
    %209 = arith.addf %208, %207 : vector<2x32xf32>
    %210 = arith.divf %208, %209 : vector<2x32xf32>
    %211 = vector.extract_strided_slice %198 {offsets = [0, 64], sizes = [2, 32], strides = [1, 1]} : vector<2x128xf32> to vector<2x32xf32>
    %212 = math.tanh %211 : vector<2x32xf32>
    %213 = vector.extract_strided_slice %198 {offsets = [0, 96], sizes = [2, 32], strides = [1, 1]} : vector<2x128xf32> to vector<2x32xf32>
    %214 = arith.negf %213 : vector<2x32xf32>
    %215 = math.exp %214 : vector<2x32xf32>
    %cst_62 = arith.constant 1.000000e+00 : f32
    %216 = vector.broadcast %cst_62 : f32 to vector<2x32xf32>
    %217 = arith.addf %216, %215 : vector<2x32xf32>
    %218 = arith.divf %216, %217 : vector<2x32xf32>
    %219 = arith.mulf %210, %189 : vector<2x32xf32>
    %220 = arith.mulf %204, %212 : vector<2x32xf32>
    %221 = arith.addf %219, %220 : vector<2x32xf32>
    %222 = math.tanh %221 : vector<2x32xf32>
    %223 = arith.mulf %218, %222 : vector<2x32xf32>
    %c0_63 = arith.constant 0 : index
    %c6_64 = arith.constant 6 : index
    %c0_65 = arith.constant 0 : index
    %224 = vector.load %arg2[%c0_63, %c6_64, %c0_65] : memref<2x8x32xf32, #tpu.memory_space<vmem>>, vector<2x1x32xf32>
    %225 = vector.shape_cast %224 : vector<2x1x32xf32> to vector<2x32xf32>
    %226 = vector.shape_cast %223 : vector<2x32xf32> to vector<2x1x32xf32>
    tpu.vector_store %arg2[%c0_63, %c6_64, %c0_65], %226 {strides = array<i32>} : memref<2x8x32xf32, #tpu.memory_space<vmem>>, vector<2x1x32xf32>,
    %c0_66 = arith.constant 0 : index
    %c7 = arith.constant 7 : index
    %c0_67 = arith.constant 0 : index
    %227 = vector.load %arg0[%c0_66, %c7, %c0_67] : memref<2x8x128xf32, #tpu.memory_space<vmem>>, vector<2x1x128xf32>
    %228 = vector.shape_cast %227 : vector<2x1x128xf32> to vector<2x128xf32>
    %cst_68 = arith.constant dense<0.000000e+00> : vector<2x128xf32>
    %229 = tpu.matmul %223, %0, %cst_68 {dimension_numbers = #tpu.dot_dimension_numbers<[1], [0], [0], [1], [0, 0, 1, 1], [], []>} : vector<2x32xf32>, vector<32x128xf32>, vector<2x128xf32> -> vector<2x128xf32>
    %230 = arith.addf %228, %229 : vector<2x128xf32>
    %231 = vector.extract_strided_slice %230 {offsets = [0, 0], sizes = [2, 32], strides = [1, 1]} : vector<2x128xf32> to vector<2x32xf32>
    %232 = arith.negf %231 : vector<2x32xf32>
    %233 = math.exp %232 : vector<2x32xf32>
    %cst_69 = arith.constant 1.000000e+00 : f32
    %234 = vector.broadcast %cst_69 : f32 to vector<2x32xf32>
    %235 = arith.addf %234, %233 : vector<2x32xf32>
    %236 = arith.divf %234, %235 : vector<2x32xf32>
    %237 = vector.extract_strided_slice %230 {offsets = [0, 32], sizes = [2, 32], strides = [1, 1]} : vector<2x128xf32> to vector<2x32xf32>
    %238 = arith.negf %237 : vector<2x32xf32>
    %239 = math.exp %238 : vector<2x32xf32>
    %cst_70 = arith.constant 1.000000e+00 : f32
    %240 = vector.broadcast %cst_70 : f32 to vector<2x32xf32>
    %241 = arith.addf %240, %239 : vector<2x32xf32>
    %242 = arith.divf %240, %241 : vector<2x32xf32>
    %243 = vector.extract_strided_slice %230 {offsets = [0, 64], sizes = [2, 32], strides = [1, 1]} : vector<2x128xf32> to vector<2x32xf32>
    %244 = math.tanh %243 : vector<2x32xf32>
    %245 = vector.extract_strided_slice %230 {offsets = [0, 96], sizes = [2, 32], strides = [1, 1]} : vector<2x128xf32> to vector<2x32xf32>
    %246 = arith.negf %245 : vector<2x32xf32>
    %247 = math.exp %246 : vector<2x32xf32>
    %cst_71 = arith.constant 1.000000e+00 : f32
    %248 = vector.broadcast %cst_71 : f32 to vector<2x32xf32>
    %249 = arith.addf %248, %247 : vector<2x32xf32>
    %250 = arith.divf %248, %249 : vector<2x32xf32>
    %251 = arith.mulf %242, %221 : vector<2x32xf32>
    %252 = arith.mulf %236, %244 : vector<2x32xf32>
    %253 = arith.addf %251, %252 : vector<2x32xf32>
    %254 = math.tanh %253 : vector<2x32xf32>
    %255 = arith.mulf %250, %254 : vector<2x32xf32>
    %c0_72 = arith.constant 0 : index
    %c7_73 = arith.constant 7 : index
    %c0_74 = arith.constant 0 : index
    %256 = vector.load %arg2[%c0_72, %c7_73, %c0_74] : memref<2x8x32xf32, #tpu.memory_space<vmem>>, vector<2x1x32xf32>
    %257 = vector.shape_cast %256 : vector<2x1x32xf32> to vector<2x32xf32>
    %258 = vector.shape_cast %255 : vector<2x32xf32> to vector<2x1x32xf32>
    tpu.vector_store %arg2[%c0_72, %c7_73, %c0_74], %258 {strides = array<i32>} : memref<2x8x32xf32, #tpu.memory_space<vmem>>, vector<2x1x32xf32>,
    return
  }
}

</mosaic_0001>

<llo_original>
// kernel: tpu_custom_call.1
$region0: #{tpu_custom_call.1}
  #allocation0 [shape = 'u32[]', space=smem, size = 0x4, offset = 0x4, fixed_abs, tag = 'smem constant byte address 0x4 - core index']
  #allocation1 [shape = 'u32[144,128]{1,0:T(1,128)}', space=vmem, size = 0x12000, scoped, tag = 'internal scratch']
  %s0 = inlined_call_operand.hbm [shape: f32[2,8,128], index: 0, kind: input, shape index: {}]
  %s1 = inlined_call_operand.hbm [shape: f32[32,128], index: 1, kind: input, shape index: {}]
  %s2 = inlined_call_operand.hbm [shape: f32[2,8,32], index: 2, kind: output, shape index: {}]
  %s3 = sld [smem:[#allocation0]]
  $region26: #{tpu_custom_call.1} parent=0
    _
  %s5 = ssub.s32 1, %s3
  %s6 = scalar_select 0, %s5, %s3
  $region1: #{tpu_custom_call.1} parent=0
    #allocation2 [shape = 'u8[8192]{0}', space=vmem, size = 0x2000, scoped, tag = 'input window, operand 0, single buffered']
    #allocation3 [shape = 's32[1]{0}', space=sflag, size = 0x4, scoped, tag = 'scoped memory for tpu_custom_call.1']
    #allocation4 [shape = 's32[1]{0}', space=sflag, size = 0x4, scoped, tag = 'scoped memory for tpu_custom_call.1']
    #allocation5 [shape = 'u8[16384]{0}', space=vmem, size = 0x4000, scoped, tag = 'input window, operand 1, single buffered']
    #allocation6 [shape = 's32[1]{0}', space=sflag, size = 0x4, scoped, tag = 'scoped memory for tpu_custom_call.1']
    #allocation7 [shape = 'u8[8192]{0}', space=vmem, size = 0x2000, scoped, tag = 'output window, operand 0, single buffered']
    %7 = vsyncpa [#allocation3], 0
    %8 = vsyncpa [#allocation6], 0
    %9 = vsyncpa [#allocation4], 0
    // Predicated region
    $region2: #{tpu_custom_call.1} parent=1 // pred_check
      _
    $region3: #{tpu_custom_call.1} parent=1 // pred_check_branch
      %11 = sbr.rel (0) target = $region5
    $region4: #{tpu_custom_call.1} parent=1 // pred_region
      %s13 = ssub.s32 256, 256
      %14 = vsyncadd [#allocation3], %s13
      %s15 = sshll.u32 [#allocation2], 4
      %s16 = int_to_ptr.vmem [resolvable:$true] %s15
      %21 = dma.hbm_to_vmem [thread:$0]  %s0, 256, %s16, [#allocation3], 128, 128, 8
    $region5: #{tpu_custom_call.1} parent=1 // pred_fallthru
      _
    // Predicated region
    $region6: #{tpu_custom_call.1} parent=1 // pred_check
      _
    $region7: #{tpu_custom_call.1} parent=1 // pred_check_branch
      %23 = sbr.rel (0) target = $region9
    $region8: #{tpu_custom_call.1} parent=1 // pred_region
      %s25 = ssub.s32 512, 512
      %26 = vsyncadd [#allocation6], %s25
      %s27 = sshll.u32 [#allocation5], 4
      %s28 = int_to_ptr.vmem [resolvable:$true] %s27
      %33 = dma.hbm_to_vmem [thread:$0]  %s1, 512, %s28, [#allocation6], 128, 128, 8
    $region9: #{tpu_custom_call.1} parent=1 // pred_fallthru
      _
    // Predicated region
    $region10: #{tpu_custom_call.1} parent=1 // pred_check
      _
    $region11: #{tpu_custom_call.1} parent=1 // pred_check_branch
      %35 = sbr.rel (0) target = $region13
    $region12: #{tpu_custom_call.1} parent=1 // pred_region
      %36 = dma.done [#allocation3], 256
    $region13: #{tpu_custom_call.1} parent=1 // pred_fallthru
      _
    // Predicated region
    $region14: #{tpu_custom_call.1} parent=1 // pred_check
      _
    $region15: #{tpu_custom_call.1} parent=1 // pred_check_branch
      %38 = sbr.rel (0) target = $region17
    $region16: #{tpu_custom_call.1} parent=1 // pred_region
      %39 = dma.done [#allocation6], 512
    $region17: #{tpu_custom_call.1} parent=1 // pred_fallthru
      _
    %v40 = vld [vmem:[#allocation5] sm:$0xff]
    %v41 = vld [vmem:[#allocation5 + $0x8] sm:$0xff]
    %v42 = vld [vmem:[#allocation5 + $0x10] sm:$0xff]
    %v43 = vld [vmem:[#allocation5 + $0x18] sm:$0xff]
    %v44 = vld [vmem:[#allocation2] sm:$0x1]
    %v45 = vld [vmem:[#allocation2 + $0x8] sm:$0x1]
    %vm46 = vcmask 261120
    %v48 = vsel %vm46, 0.0, 0
    %50 = vmatprep.subr.mxu0 0.0
    %51 = vmatpush1.msra.mxu0 0.0
    %52 = vmatprep.subr.mxu0 0.0
    %53 = vmatpush1.msra.mxu0 0.0
    %54 = vmatprep.subr.mxu0 0.0
    %55 = vmatpush1.msra.mxu0 0.0
    %56 = vmatprep.subr.mxu0 0.0
    %57 = vmatpush1.msra.mxu0 0.0
    %58 = vmatprep.subr.mxu0 0.0
    %59 = vmatpush1.msra.mxu0 0.0
    %60 = vmatprep.subr.mxu0 0.0
    %61 = vmatpush1.msra.mxu0 0.0
    %62 = vmatprep.subr.mxu0 0.0
    %63 = vmatpush1.msra.mxu0 0.0
    %64 = vmatprep.subr.mxu0 0.0
    %65 = vmatpush1.msra.mxu0 0.0
    %66 = vmatprep.subr.mxu0 0.0
    %67 = vmatpush1.msra.mxu0 0.0
    %68 = vmatprep.subr.mxu0 0.0
    %69 = vmatpush1.msra.mxu0 0.0
    %70 = vmatprep.subr.mxu0 0.0
    %71 = vmatpush1.msra.mxu0 0.0
    %72 = vmatprep.subr.mxu0 0.0
    %73 = vmatpush1.msra.mxu0 0.0
    %74 = vmatprep.subr.mxu0 0.0
    %75 = vmatpush1.msra.mxu0 %v43
    %76 = vmatprep.subr.mxu0 0.0
    %77 = vmatpush1.msra.mxu0 %v42
    %78 = vmatprep.subr.mxu0 0.0
    %79 = vmatpush1.msra.mxu0 %v41
    %80 = vmatprep.subr.mxu0 0.0
    %81 = vmatpush1.msra.mxu0 %v40
    %82 = vmatprep.subr.mxu0 0.0
    %83 = vmatpush2.msra.mxu0 0.0
    %84 = vmatprep.subr.mxu0 0.0
    %85 = vmatpush2.msra.mxu0 0.0
    %86 = vmatprep.subr.mxu0 0.0
    %87 = vmatpush2.msra.mxu0 0.0
    %88 = vmatprep.subr.mxu0 0.0
    %89 = vmatpush2.msra.mxu0 0.0
    %90 = vmatprep.subr.mxu0 0.0
    %91 = vmatpush2.msra.mxu0 0.0
    %92 = vmatprep.subr.mxu0 0.0
    %93 = vmatpush2.msra.mxu0 0.0
    %94 = vmatprep.subr.mxu0 0.0
    %95 = vmatpush2.msra.mxu0 0.0
    %96 = vmatprep.subr.mxu0 0.0
    %97 = vmatpush2.msra.mxu0 0.0
    %98 = vmatprep.subr.mxu0 0.0
    %99 = vmatpush2.msra.mxu0 0.0
    %100 = vmatprep.subr.mxu0 0.0
    %101 = vmatpush2.msra.mxu0 0.0
    %102 = vmatprep.subr.mxu0 0.0
    %103 = vmatpush2.msra.mxu0 0.0
    %104 = vmatprep.subr.mxu0 0.0
    %105 = vmatpush2.msra.mxu0 0.0
    %106 = vmatprep.subr.mxu0 0.0
    %107 = vmatpush2.msra.mxu0 0.0
    %108 = vmatprep.subr.mxu0 0.0
    %109 = vmatpush2.msra.mxu0 0.0
    %110 = vmatprep.subr.mxu0 0.0
    %111 = vmatpush2.msra.mxu0 0.0
    %112 = vmatprep.subr.mxu0 0.0
    %113 = vmatpush2.msra.mxu0 0.0
    %114 = vmatprep.mubr.f32.mxu0 0.0
    %115 = vmatmul.mubr.f32.gmra.mxu0 %v48
    %v116 = vpop.f32.mrf.mxu0
    %v117 = vadd.f32 0.0, %v116
    %v118 = vpop.f32.mrf.mxu0
    %119 = vdwg.mxu0
    %v121 = vrot.slane %v117, 1
    %v124 = vadd.f32 %v44, %v117
    %v125 = vadd.f32 %v45, %v121
    %v126 = vxor.u32 %v124, 2147483648
    %v127 = vxor.u32 %v125, 2147483648
    %v128 = vmul.f32 %v126, 1.442695
    %v129 = vpow.pop %v128
    %v130 = vmul.f32 %v127, 1.442695
    %v131 = vpow.pop %v130
    %v132 = vadd.f32 %v129, 1.0
    %v133 = vadd.f32 %v131, 1.0
    %v134 = vrcp.pop %v132
    %v135 = vmul.f32 1.0, %v134
    %v136 = vrcp.pop %v133
    %v137 = vmul.f32 1.0, %v136
    %v138 = vtanh.pop %v124
    %v139 = vtanh.pop %v125
    %v140 = vmul.f32 %v135, 0.0
    %v141 = vmul.f32 %v137, 0.0
    %144 = vrot.lane.b32.xlu0 %v138, 64
    %v145 = vpop.permute.xlu0 %144
    %146 = vrot.lane.b32.xlu0 %v139, 64
    %v147 = vpop.permute.xlu0 %146
    %v150 = vmul.f32 %v135, %v145
    %v151 = vmul.f32 %v137, %v147
    %154 = vrot.lane.b32.xlu0 %v150, 32
    %v155 = vpop.permute.xlu0 %154
    %156 = vrot.lane.b32.xlu0 %v151, 32
    %v157 = vpop.permute.xlu0 %156
    %v160 = vadd.f32 %v140, %v155
    %v161 = vadd.f32 %v141, %v157
    %v162 = vtanh.pop %v160
    %v163 = vtanh.pop %v161
    %166 = vrot.lane.b32.xlu0 %v162, 64
    %v167 = vpop.permute.xlu0 %166
    %168 = vrot.lane.b32.xlu0 %v163, 64
    %v169 = vpop.permute.xlu0 %168
    %v172 = vmul.f32 %v135, %v167
    %v173 = vmul.f32 %v137, %v169
    %176 = vrot.lane.b32.xlu0 %v172, 32
    %v177 = vpop.permute.xlu0 %176
    %178 = vrot.lane.b32.xlu0 %v173, 32
    %v179 = vpop.permute.xlu0 %178
    %vm182 = vcmask 253952
    %183 = vst.msk [vmem:[#allocation7] sm:$0x1] %vm182, %v177
    %184 = vst.msk [vmem:[#allocation7 + $0x8] sm:$0x1] %vm182, %v179
    %v185 = vld [vmem:[#allocation2 + $0x1] sm:$0x1]
    %v186 = vld [vmem:[#allocation2 + $0x9] sm:$0x1]
    %v187 = vrot.slane %v173, 7
    %vm188 = vcmask 1041409
    %v189 = vsel %vm188, %v187, %v172
    %190 = vrot.lane.b32.xlu0 %v189, 32
    %v191 = vpop.permute.xlu0 %190
    %v192 = vsel %vm46, %v191, 0
    %194 = vmatprep.subr.mxu0 0.0
    %195 = vmatpush1.msra.mxu0 0.0
    %196 = vmatprep.subr.mxu0 0.0
    %197 = vmatpush1.msra.mxu0 0.0
    %198 = vmatprep.subr.mxu0 0.0
    %199 = vmatpush1.msra.mxu0 0.0
    %200 = vmatprep.subr.mxu0 0.0
    %201 = vmatpush1.msra.mxu0 0.0
    %202 = vmatprep.subr.mxu0 0.0
    %203 = vmatpush1.msra.mxu0 0.0
    %204 = vmatprep.subr.mxu0 0.0
    %205 = vmatpush1.msra.mxu0 0.0
    %206 = vmatprep.subr.mxu0 0.0
    %207 = vmatpush1.msra.mxu0 0.0
    %208 = vmatprep.subr.mxu0 0.0
    %209 = vmatpush1.msra.mxu0 0.0
    %210 = vmatprep.subr.mxu0 0.0
    %211 = vmatpush1.msra.mxu0 0.0
    %212 = vmatprep.subr.mxu0 0.0
    %213 = vmatpush1.msra.mxu0 0.0
    %214 = vmatprep.subr.mxu0 0.0
    %215 = vmatpush1.msra.mxu0 0.0
    %216 = vmatprep.subr.mxu0 0.0
    %217 = vmatpush1.msra.mxu0 0.0
    %218 = vmatprep.subr.mxu0 0.0
    %219 = vmatpush1.msra.mxu0 %v43
    %220 = vmatprep.subr.mxu0 0.0
    %221 = vmatpush1.msra.mxu0 %v42
    %222 = vmatprep.subr.mxu0 0.0
    %223 = vmatpush1.msra.mxu0 %v41
    %224 = vmatprep.subr.mxu0 0.0
    %225 = vmatpush1.msra.mxu0 %v40
    %226 = vmatprep.subr.mxu0 0.0
    %227 = vmatpush2.msra.mxu0 0.0
    %228 = vmatprep.subr.mxu0 0.0
    %229 = vmatpush2.msra.mxu0 0.0
    %230 = vmatprep.subr.mxu0 0.0
    %231 = vmatpush2.msra.mxu0 0.0
    %232 = vmatprep.subr.mxu0 0.0
    %233 = vmatpush2.msra.mxu0 0.0
    %234 = vmatprep.subr.mxu0 0.0
    %235 = vmatpush2.msra.mxu0 0.0
    %236 = vmatprep.subr.mxu0 0.0
    %237 = vmatpush2.msra.mxu0 0.0
    %238 = vmatprep.subr.mxu0 0.0
    %239 = vmatpush2.msra.mxu0 0.0
    %240 = vmatprep.subr.mxu0 0.0
    %241 = vmatpush2.msra.mxu0 0.0
    %242 = vmatprep.subr.mxu0 0.0
    %243 = vmatpush2.msra.mxu0 0.0
    %244 = vmatprep.subr.mxu0 0.0
    %245 = vmatpush2.msra.mxu0 0.0
    %246 = vmatprep.subr.mxu0 0.0
    %247 = vmatpush2.msra.mxu0 0.0
    %248 = vmatprep.subr.mxu0 0.0
    %249 = vmatpush2.msra.mxu0 0.0
    %250 = vmatprep.subr.mxu0 0.0
    %251 = vmatpush2.msra.mxu0 0.0
    %252 = vmatprep.subr.mxu0 0.0
    %253 = vmatpush2.msra.mxu0 0.0
    %254 = vmatprep.subr.mxu0 0.0
    %255 = vmatpush2.msra.mxu0 0.0
    %256 = vmatprep.subr.mxu0 0.0
    %257 = vmatpush2.msra.mxu0 0.0
    %258 = vmatprep.mubr.f32.mxu0 0.0
    %259 = vmatmul.mubr.f32.gmra.mxu0 %v192
    %v260 = vpop.f32.mrf.mxu0
    %v261 = vadd.f32 0.0, %v260
    %v262 = vpop.f32.mrf.mxu0
    %263 = vdwg.mxu0
    %v265 = vrot.slane %v261, 1
    %v268 = vadd.f32 %v185, %v261
    %v269 = vadd.f32 %v186, %v265
    %v270 = vxor.u32 %v268, 2147483648
    %v271 = vxor.u32 %v269, 2147483648
    %v272 = vmul.f32 %v270, 1.442695
    %v273 = vpow.pop %v272
    %v274 = vmul.f32 %v271, 1.442695
    %v275 = vpow.pop %v274
    %v276 = vadd.f32 %v273, 1.0
    %v277 = vadd.f32 %v275, 1.0
    %v278 = vrcp.pop %v276
    %v279 = vmul.f32 1.0, %v278
    %v280 = vrcp.pop %v277
    %v281 = vmul.f32 1.0, %v280
    %v282 = vtanh.pop %v268
    %v283 = vtanh.pop %v269
    %v284 = vmul.f32 %v279, %v160
    %v285 = vmul.f32 %v281, %v161
    %288 = vrot.lane.b32.xlu0 %v282, 64
    %v289 = vpop.permute.xlu0 %288
    %290 = vrot.lane.b32.xlu0 %v283, 64
    %v291 = vpop.permute.xlu0 %290
    %v294 = vmul.f32 %v279, %v289
    %v295 = vmul.f32 %v281, %v291
    %298 = vrot.lane.b32.xlu0 %v294, 32
    %v299 = vpop.permute.xlu0 %298
    %300 = vrot.lane.b32.xlu0 %v295, 32
    %v301 = vpop.permute.xlu0 %300
    %v304 = vadd.f32 %v284, %v299
    %v305 = vadd.f32 %v285, %v301
    %v306 = vtanh.pop %v304
    %v307 = vtanh.pop %v305
    %310 = vrot.lane.b32.xlu0 %v306, 64
    %v311 = vpop.permute.xlu0 %310
    %312 = vrot.lane.b32.xlu0 %v307, 64
    %v313 = vpop.permute.xlu0 %312
    %v316 = vmul.f32 %v279, %v311
    %v317 = vmul.f32 %v281, %v313
    %320 = vrot.lane.b32.xlu0 %v316, 32
    %v321 = vpop.permute.xlu0 %320
    %322 = vrot.lane.b32.xlu0 %v317, 32
    %v323 = vpop.permute.xlu0 %322
    %326 = vst.msk [vmem:[#allocation7 + $0x1] sm:$0x1] %vm182, %v321
    %327 = vst.msk [vmem:[#allocation7 + $0x9] sm:$0x1] %vm182, %v323
    %v328 = vld [vmem:[#allocation2 + $0x2] sm:$0x1]
    %v329 = vld [vmem:[#allocation2 + $0xa] sm:$0x1]
    %v330 = vrot.slane %v317, 7
    %v331 = vsel %vm188, %v330, %v316
    %332 = vrot.lane.b32.xlu0 %v331, 32
    %v333 = vpop.permute.xlu0 %332
    %v334 = vsel %vm46, %v333, 0
    %336 = vmatprep.subr.mxu0 0.0
    %337 = vmatpush1.msra.mxu0 0.0
    %338 = vmatprep.subr.mxu0 0.0
    %339 = vmatpush1.msra.mxu0 0.0
    %340 = vmatprep.subr.mxu0 0.0
    %341 = vmatpush1.msra.mxu0 0.0
    %342 = vmatprep.subr.mxu0 0.0
    %343 = vmatpush1.msra.mxu0 0.0
    %344 = vmatprep.subr.mxu0 0.0
    %345 = vmatpush1.msra.mxu0 0.0
    %346 = vmatprep.subr.mxu0 0.0
    %347 = vmatpush1.msra.mxu0 0.0
    %348 = vmatprep.subr.mxu0 0.0
    %349 = vmatpush1.msra.mxu0 0.0
    %350 = vmatprep.subr.mxu0 0.0
    %351 = vmatpush1.msra.mxu0 0.0
    %352 = vmatprep.subr.mxu0 0.0
    %353 = vmatpush1.msra.mxu0 0.0
    %354 = vmatprep.subr.mxu0 0.0
    %355 = vmatpush1.msra.mxu0 0.0
    %356 = vmatprep.subr.mxu0 0.0
    %357 = vmatpush1.msra.mxu0 0.0
    %358 = vmatprep.subr.mxu0 0.0
    %359 = vmatpush1.msra.mxu0 0.0
    %360 = vmatprep.subr.mxu0 0.0
    %361 = vmatpush1.msra.mxu0 %v43
    %362 = vmatprep.subr.mxu0 0.0
    %363 = vmatpush1.msra.mxu0 %v42
    %364 = vmatprep.subr.mxu0 0.0
    %365 = vmatpush1.msra.mxu0 %v41
    %366 = vmatprep.subr.mxu0 0.0
    %367 = vmatpush1.msra.mxu0 %v40
    %368 = vmatprep.subr.mxu0 0.0
    %369 = vmatpush2.msra.mxu0 0.0
    %370 = vmatprep.subr.mxu0 0.0
    %371 = vmatpush2.msra.mxu0 0.0
    %372 = vmatprep.subr.mxu0 0.0
    %373 = vmatpush2.msra.mxu0 0.0
    %374 = vmatprep.subr.mxu0 0.0
    %375 = vmatpush2.msra.mxu0 0.0
    %376 = vmatprep.subr.mxu0 0.0
    %377 = vmatpush2.msra.mxu0 0.0
    %378 = vmatprep.subr.mxu0 0.0
    %379 = vmatpush2.msra.mxu0 0.0
    %380 = vmatprep.subr.mxu0 0.0
    %381 = vmatpush2.msra.mxu0 0.0
    %382 = vmatprep.subr.mxu0 0.0
    %383 = vmatpush2.msra.mxu0 0.0
    %384 = vmatprep.subr.mxu0 0.0
    %385 = vmatpush2.msra.mxu0 0.0
    %386 = vmatprep.subr.mxu0 0.0
    %387 = vmatpush2.msra.mxu0 0.0
    %388 = vmatprep.subr.mxu0 0.0
    %389 = vmatpush2.msra.mxu0 0.0
    %390 = vmatprep.subr.mxu0 0.0
    %391 = vmatpush2.msra.mxu0 0.0
    %392 = vmatprep.subr.mxu0 0.0
    %393 = vmatpush2.msra.mxu0 0.0
    %394 = vmatprep.subr.mxu0 0.0
    %395 = vmatpush2.msra.mxu0 0.0
    %396 = vmatprep.subr.mxu0 0.0
    %397 = vmatpush2.msra.mxu0 0.0
    %398 = vmatprep.subr.mxu0 0.0
    %399 = vmatpush2.msra.mxu0 0.0
    %400 = vmatprep.mubr.f32.mxu0 0.0
    %401 = vmatmul.mubr.f32.gmra.mxu0 %v334
    %v402 = vpop.f32.mrf.mxu0
    %v403 = vadd.f32 0.0, %v402
    %v404 = vpop.f32.mrf.mxu0
    %405 = vdwg.mxu0
    %v407 = vrot.slane %v403, 1
    %v410 = vadd.f32 %v328, %v403
    %v411 = vadd.f32 %v329, %v407
    %v412 = vxor.u32 %v410, 2147483648
    %v413 = vxor.u32 %v411, 2147483648
    %v414 = vmul.f32 %v412, 1.442695
    %v415 = vpow.pop %v414
    %v416 = vmul.f32 %v413, 1.442695
    %v417 = vpow.pop %v416
    %v418 = vadd.f32 %v415, 1.0
    %v419 = vadd.f32 %v417, 1.0
    %v420 = vrcp.pop %v418
    %v421 = vmul.f32 1.0, %v420
    %v422 = vrcp.pop %v419
    %v423 = vmul.f32 1.0, %v422
    %v424 = vtanh.pop %v410
    %v425 = vtanh.pop %v411
    %v426 = vmul.f32 %v421, %v304
    %v427 = vmul.f32 %v423, %v305
    %430 = vrot.lane.b32.xlu0 %v424, 64
    %v431 = vpop.permute.xlu0 %430
    %432 = vrot.lane.b32.xlu0 %v425, 64
    %v433 = vpop.permute.xlu0 %432
    %v436 = vmul.f32 %v421, %v431
    %v437 = vmul.f32 %v423, %v433
    %440 = vrot.lane.b32.xlu0 %v436, 32
    %v441 = vpop.permute.xlu0 %440
    %442 = vrot.lane.b32.xlu0 %v437, 32
    %v443 = vpop.permute.xlu0 %442
    %v446 = vadd.f32 %v426, %v441
    %v447 = vadd.f32 %v427, %v443
    %v448 = vtanh.pop %v446
    %v449 = vtanh.pop %v447
    %452 = vrot.lane.b32.xlu0 %v448, 64
    %v453 = vpop.permute.xlu0 %452
    %454 = vrot.lane.b32.xlu0 %v449, 64
    %v455 = vpop.permute.xlu0 %454
    %v458 = vmul.f32 %v421, %v453
    %v459 = vmul.f32 %v423, %v455
    %462 = vrot.lane.b32.xlu0 %v458, 32
    %v463 = vpop.permute.xlu0 %462
    %464 = vrot.lane.b32.xlu0 %v459, 32
    %v465 = vpop.permute.xlu0 %464
    %468 = vst.msk [vmem:[#allocation7 + $0x2] sm:$0x1] %vm182, %v463
    %469 = vst.msk [vmem:[#allocation7 + $0xa] sm:$0x1] %vm182, %v465
    %v470 = vld [vmem:[#allocation2 + $0x3] sm:$0x1]
    %v471 = vld [vmem:[#allocation2 + $0xb] sm:$0x1]
    %v472 = vrot.slane %v459, 7
    %v473 = vsel %vm188, %v472, %v458
    %474 = vrot.lane.b32.xlu0 %v473, 32
    %v475 = vpop.permute.xlu0 %474
    %v476 = vsel %vm46, %v475, 0
    %478 = vmatprep.subr.mxu0 0.0
    %479 = vmatpush1.msra.mxu0 0.0
    %480 = vmatprep.subr.mxu0 0.0
    %481 = vmatpush1.msra.mxu0 0.0
    %482 = vmatprep.subr.mxu0 0.0
    %483 = vmatpush1.msra.mxu0 0.0
    %484 = vmatprep.subr.mxu0 0.0
    %485 = vmatpush1.msra.mxu0 0.0
    %486 = vmatprep.subr.mxu0 0.0
    %487 = vmatpush1.msra.mxu0 0.0
    %488 = vmatprep.subr.mxu0 0.0
    %489 = vmatpush1.msra.mxu0 0.0
    %490 = vmatprep.subr.mxu0 0.0
    %491 = vmatpush1.msra.mxu0 0.0
    %492 = vmatprep.subr.mxu0 0.0
    %493 = vmatpush1.msra.mxu0 0.0
    %494 = vmatprep.subr.mxu0 0.0
    %495 = vmatpush1.msra.mxu0 0.0
    %496 = vmatprep.subr.mxu0 0.0
    %497 = vmatpush1.msra.mxu0 0.0
    %498 = vmatprep.subr.mxu0 0.0
    %499 = vmatpush1.msra.mxu0 0.0
    %500 = vmatprep.subr.mxu0 0.0
    %501 = vmatpush1.msra.mxu0 0.0
    %502 = vmatprep.subr.mxu0 0.0
    %503 = vmatpush1.msra.mxu0 %v43
    %504 = vmatprep.subr.mxu0 0.0
    %505 = vmatpush1.msra.mxu0 %v42
    %506 = vmatprep.subr.mxu0 0.0
    %507 = vmatpush1.msra.mxu0 %v41
    %508 = vmatprep.subr.mxu0 0.0
    %509 = vmatpush1.msra.mxu0 %v40
    %510 = vmatprep.subr.mxu0 0.0
    %511 = vmatpush2.msra.mxu0 0.0
    %512 = vmatprep.subr.mxu0 0.0
    %513 = vmatpush2.msra.mxu0 0.0
    %514 = vmatprep.subr.mxu0 0.0
    %515 = vmatpush2.msra.mxu0 0.0
    %516 = vmatprep.subr.mxu0 0.0
    %517 = vmatpush2.msra.mxu0 0.0
    %518 = vmatprep.subr.mxu0 0.0
    %519 = vmatpush2.msra.mxu0 0.0
    %520 = vmatprep.subr.mxu0 0.0
    %521 = vmatpush2.msra.mxu0 0.0
    %522 = vmatprep.subr.mxu0 0.0
    %523 = vmatpush2.msra.mxu0 0.0
    %524 = vmatprep.subr.mxu0 0.0
    %525 = vmatpush2.msra.mxu0 0.0
    %526 = vmatprep.subr.mxu0 0.0
    %527 = vmatpush2.msra.mxu0 0.0
    %528 = vmatprep.subr.mxu0 0.0
    %529 = vmatpush2.msra.mxu0 0.0
    %530 = vmatprep.subr.mxu0 0.0
    %531 = vmatpush2.msra.mxu0 0.0
    %532 = vmatprep.subr.mxu0 0.0
    %533 = vmatpush2.msra.mxu0 0.0
    %534 = vmatprep.subr.mxu0 0.0
    %535 = vmatpush2.msra.mxu0 0.0
    %536 = vmatprep.subr.mxu0 0.0
    %537 = vmatpush2.msra.mxu0 0.0
    %538 = vmatprep.subr.mxu0 0.0
    %539 = vmatpush2.msra.mxu0 0.0
    %540 = vmatprep.subr.mxu0 0.0
    %541 = vmatpush2.msra.mxu0 0.0
    %542 = vmatprep.mubr.f32.mxu0 0.0
    %543 = vmatmul.mubr.f32.gmra.mxu0 %v476
    %v544 = vpop.f32.mrf.mxu0
    %v545 = vadd.f32 0.0, %v544
    %v546 = vpop.f32.mrf.mxu0
    %547 = vdwg.mxu0
    %v549 = vrot.slane %v545, 1
    %v552 = vadd.f32 %v470, %v545
    %v553 = vadd.f32 %v471, %v549
    %v554 = vxor.u32 %v552, 2147483648
    %v555 = vxor.u32 %v553, 2147483648
    %v556 = vmul.f32 %v554, 1.442695
    %v557 = vpow.pop %v556
    %v558 = vmul.f32 %v555, 1.442695
    %v559 = vpow.pop %v558
    %v560 = vadd.f32 %v557, 1.0
    %v561 = vadd.f32 %v559, 1.0
    %v562 = vrcp.pop %v560
    %v563 = vmul.f32 1.0, %v562
    %v564 = vrcp.pop %v561
    %v565 = vmul.f32 1.0, %v564
    %v566 = vtanh.pop %v552
    %v567 = vtanh.pop %v553
    %v568 = vmul.f32 %v563, %v446
    %v569 = vmul.f32 %v565, %v447
    %572 = vrot.lane.b32.xlu0 %v566, 64
    %v573 = vpop.permute.xlu0 %572
    %574 = vrot.lane.b32.xlu0 %v567, 64
    %v575 = vpop.permute.xlu0 %574
    %v578 = vmul.f32 %v563, %v573
    %v579 = vmul.f32 %v565, %v575
    %582 = vrot.lane.b32.xlu0 %v578, 32
    %v583 = vpop.permute.xlu0 %582
    %584 = vrot.lane.b32.xlu0 %v579, 32
    %v585 = vpop.permute.xlu0 %584
    %v588 = vadd.f32 %v568, %v583
    %v589 = vadd.f32 %v569, %v585
    %v590 = vtanh.pop %v588
    %v591 = vtanh.pop %v589
    %594 = vrot.lane.b32.xlu0 %v590, 64
    %v595 = vpop.permute.xlu0 %594
    %596 = vrot.lane.b32.xlu0 %v591, 64
    %v597 = vpop.permute.xlu0 %596
    %v600 = vmul.f32 %v563, %v595
    %v601 = vmul.f32 %v565, %v597
    %604 = vrot.lane.b32.xlu0 %v600, 32
    %v605 = vpop.permute.xlu0 %604
    %606 = vrot.lane.b32.xlu0 %v601, 32
    %v607 = vpop.permute.xlu0 %606
    %610 = vst.msk [vmem:[#allocation7 + $0x3] sm:$0x1] %vm182, %v605
    %611 = vst.msk [vmem:[#allocation7 + $0xb] sm:$0x1] %vm182, %v607
    %v612 = vld [vmem:[#allocation2 + $0x4] sm:$0x1]
    %v613 = vld [vmem:[#allocation2 + $0xc] sm:$0x1]
    %v614 = vrot.slane %v601, 7
    %v615 = vsel %vm188, %v614, %v600
    %616 = vrot.lane.b32.xlu0 %v615, 32
    %v617 = vpop.permute.xlu0 %616
    %v618 = vsel %vm46, %v617, 0
    %620 = vmatprep.subr.mxu0 0.0
    %621 = vmatpush1.msra.mxu0 0.0
    %622 = vmatprep.subr.mxu0 0.0
    %623 = vmatpush1.msra.mxu0 0.0
    %624 = vmatprep.subr.mxu0 0.0
    %625 = vmatpush1.msra.mxu0 0.0
    %626 = vmatprep.subr.mxu0 0.0
    %627 = vmatpush1.msra.mxu0 0.0
    %628 = vmatprep.subr.mxu0 0.0
    %629 = vmatpush1.msra.mxu0 0.0
    %630 = vmatprep.subr.mxu0 0.0
    %631 = vmatpush1.msra.mxu0 0.0
    %632 = vmatprep.subr.mxu0 0.0
    %633 = vmatpush1.msra.mxu0 0.0
    %634 = vmatprep.subr.mxu0 0.0
    %635 = vmatpush1.msra.mxu0 0.0
    %636 = vmatprep.subr.mxu0 0.0
    %637 = vmatpush1.msra.mxu0 0.0
    %638 = vmatprep.subr.mxu0 0.0
    %639 = vmatpush1.msra.mxu0 0.0
    %640 = vmatprep.subr.mxu0 0.0
    %641 = vmatpush1.msra.mxu0 0.0
    %642 = vmatprep.subr.mxu0 0.0
    %643 = vmatpush1.msra.mxu0 0.0
    %644 = vmatprep.subr.mxu0 0.0
    %645 = vmatpush1.msra.mxu0 %v43
    %646 = vmatprep.subr.mxu0 0.0
    %647 = vmatpush1.msra.mxu0 %v42
    %648 = vmatprep.subr.mxu0 0.0
    %649 = vmatpush1.msra.mxu0 %v41
    %650 = vmatprep.subr.mxu0 0.0
    %651 = vmatpush1.msra.mxu0 %v40
    %652 = vmatprep.subr.mxu0 0.0
    %653 = vmatpush2.msra.mxu0 0.0
    %654 = vmatprep.subr.mxu0 0.0
    %655 = vmatpush2.msra.mxu0 0.0
    %656 = vmatprep.subr.mxu0 0.0
    %657 = vmatpush2.msra.mxu0 0.0
    %658 = vmatprep.subr.mxu0 0.0
    %659 = vmatpush2.msra.mxu0 0.0
    %660 = vmatprep.subr.mxu0 0.0
    %661 = vmatpush2.msra.mxu0 0.0
    %662 = vmatprep.subr.mxu0 0.0
    %663 = vmatpush2.msra.mxu0 0.0
    %664 = vmatprep.subr.mxu0 0.0
    %665 = vmatpush2.msra.mxu0 0.0
    %666 = vmatprep.subr.mxu0 0.0
    %667 = vmatpush2.msra.mxu0 0.0
    %668 = vmatprep.subr.mxu0 0.0
    %669 = vmatpush2.msra.mxu0 0.0
    %670 = vmatprep.subr.mxu0 0.0
    %671 = vmatpush2.msra.mxu0 0.0
    %672 = vmatprep.subr.mxu0 0.0
    %673 = vmatpush2.msra.mxu0 0.0
    %674 = vmatprep.subr.mxu0 0.0
    %675 = vmatpush2.msra.mxu0 0.0
    %676 = vmatprep.subr.mxu0 0.0
    %677 = vmatpush2.msra.mxu0 0.0
    %678 = vmatprep.subr.mxu0 0.0
    %679 = vmatpush2.msra.mxu0 0.0
    %680 = vmatprep.subr.mxu0 0.0
    %681 = vmatpush2.msra.mxu0 0.0
    %682 = vmatprep.subr.mxu0 0.0
    %683 = vmatpush2.msra.mxu0 0.0
    %684 = vmatprep.mubr.f32.mxu0 0.0
    %685 = vmatmul.mubr.f32.gmra.mxu0 %v618
    %v686 = vpop.f32.mrf.mxu0
    %v687 = vadd.f32 0.0, %v686
    %v688 = vpop.f32.mrf.mxu0
    %689 = vdwg.mxu0
    %v691 = vrot.slane %v687, 1
    %v694 = vadd.f32 %v612, %v687
    %v695 = vadd.f32 %v613, %v691
    %v696 = vxor.u32 %v694, 2147483648
    %v697 = vxor.u32 %v695, 2147483648
    %v698 = vmul.f32 %v696, 1.442695
    %v699 = vpow.pop %v698
    %v700 = vmul.f32 %v697, 1.442695
    %v701 = vpow.pop %v700
    %v702 = vadd.f32 %v699, 1.0
    %v703 = vadd.f32 %v701, 1.0
    %v704 = vrcp.pop %v702
    %v705 = vmul.f32 1.0, %v704
    %v706 = vrcp.pop %v703
    %v707 = vmul.f32 1.0, %v706
    %v708 = vtanh.pop %v694
    %v709 = vtanh.pop %v695
    %v710 = vmul.f32 %v705, %v588
    %v711 = vmul.f32 %v707, %v589
    %714 = vrot.lane.b32.xlu0 %v708, 64
    %v715 = vpop.permute.xlu0 %714
    %716 = vrot.lane.b32.xlu0 %v709, 64
    %v717 = vpop.permute.xlu0 %716
    %v720 = vmul.f32 %v705, %v715
    %v721 = vmul.f32 %v707, %v717
    %724 = vrot.lane.b32.xlu0 %v720, 32
    %v725 = vpop.permute.xlu0 %724
    %726 = vrot.lane.b32.xlu0 %v721, 32
    %v727 = vpop.permute.xlu0 %726
    %v730 = vadd.f32 %v710, %v725
    %v731 = vadd.f32 %v711, %v727
    %v732 = vtanh.pop %v730
    %v733 = vtanh.pop %v731
    %736 = vrot.lane.b32.xlu0 %v732, 64
    %v737 = vpop.permute.xlu0 %736
    %738 = vrot.lane.b32.xlu0 %v733, 64
    %v739 = vpop.permute.xlu0 %738
    %v742 = vmul.f32 %v705, %v737
    %v743 = vmul.f32 %v707, %v739
    %746 = vrot.lane.b32.xlu0 %v742, 32
    %v747 = vpop.permute.xlu0 %746
    %748 = vrot.lane.b32.xlu0 %v743, 32
    %v749 = vpop.permute.xlu0 %748
    %752 = vst.msk [vmem:[#allocation7 + $0x4] sm:$0x1] %vm182, %v747
    %753 = vst.msk [vmem:[#allocation7 + $0xc] sm:$0x1] %vm182, %v749
    %v754 = vld [vmem:[#allocation2 + $0x5] sm:$0x1]
    %v755 = vld [vmem:[#allocation2 + $0xd] sm:$0x1]
    %v756 = vrot.slane %v743, 7
    %v757 = vsel %vm188, %v756, %v742
    %758 = vrot.lane.b32.xlu0 %v757, 32
    %v759 = vpop.permute.xlu0 %758
    %v760 = vsel %vm46, %v759, 0
    %762 = vmatprep.subr.mxu0 0.0
    %763 = vmatpush1.msra.mxu0 0.0
    %764 = vmatprep.subr.mxu0 0.0
    %765 = vmatpush1.msra.mxu0 0.0
    %766 = vmatprep.subr.mxu0 0.0
    %767 = vmatpush1.msra.mxu0 0.0
    %768 = vmatprep.subr.mxu0 0.0
    %769 = vmatpush1.msra.mxu0 0.0
    %770 = vmatprep.subr.mxu0 0.0
    %771 = vmatpush1.msra.mxu0 0.0
    %772 = vmatprep.subr.mxu0 0.0
    %773 = vmatpush1.msra.mxu0 0.0
    %774 = vmatprep.subr.mxu0 0.0
    %775 = vmatpush1.msra.mxu0 0.0
    %776 = vmatprep.subr.mxu0 0.0
    %777 = vmatpush1.msra.mxu0 0.0
    %778 = vmatprep.subr.mxu0 0.0
    %779 = vmatpush1.msra.mxu0 0.0
    %780 = vmatprep.subr.mxu0 0.0
    %781 = vmatpush1.msra.mxu0 0.0
    %782 = vmatprep.subr.mxu0 0.0
    %783 = vmatpush1.msra.mxu0 0.0
    %784 = vmatprep.subr.mxu0 0.0
    %785 = vmatpush1.msra.mxu0 0.0
    %786 = vmatprep.subr.mxu0 0.0
    %787 = vmatpush1.msra.mxu0 %v43
    %788 = vmatprep.subr.mxu0 0.0
    %789 = vmatpush1.msra.mxu0 %v42
    %790 = vmatprep.subr.mxu0 0.0
    %791 = vmatpush1.msra.mxu0 %v41
    %792 = vmatprep.subr.mxu0 0.0
    %793 = vmatpush1.msra.mxu0 %v40
    %794 = vmatprep.subr.mxu0 0.0
    %795 = vmatpush2.msra.mxu0 0.0
    %796 = vmatprep.subr.mxu0 0.0
    %797 = vmatpush2.msra.mxu0 0.0
    %798 = vmatprep.subr.mxu0 0.0
    %799 = vmatpush2.msra.mxu0 0.0
    %800 = vmatprep.subr.mxu0 0.0
    %801 = vmatpush2.msra.mxu0 0.0
    %802 = vmatprep.subr.mxu0 0.0
    %803 = vmatpush2.msra.mxu0 0.0
    %804 = vmatprep.subr.mxu0 0.0
    %805 = vmatpush2.msra.mxu0 0.0
    %806 = vmatprep.subr.mxu0 0.0
    %807 = vmatpush2.msra.mxu0 0.0
    %808 = vmatprep.subr.mxu0 0.0
    %809 = vmatpush2.msra.mxu0 0.0
    %810 = vmatprep.subr.mxu0 0.0
    %811 = vmatpush2.msra.mxu0 0.0
    %812 = vmatprep.subr.mxu0 0.0
    %813 = vmatpush2.msra.mxu0 0.0
    %814 = vmatprep.subr.mxu0 0.0
    %815 = vmatpush2.msra.mxu0 0.0
    %816 = vmatprep.subr.mxu0 0.0
    %817 = vmatpush2.msra.mxu0 0.0
    %818 = vmatprep.subr.mxu0 0.0
    %819 = vmatpush2.msra.mxu0 0.0
    %820 = vmatprep.subr.mxu0 0.0
    %821 = vmatpush2.msra.mxu0 0.0
    %822 = vmatprep.subr.mxu0 0.0
    %823 = vmatpush2.msra.mxu0 0.0
    %824 = vmatprep.subr.mxu0 0.0
    %825 = vmatpush2.msra.mxu0 0.0
    %826 = vmatprep.mubr.f32.mxu0 0.0
    %827 = vmatmul.mubr.f32.gmra.mxu0 %v760
    %v828 = vpop.f32.mrf.mxu0
    %v829 = vadd.f32 0.0, %v828
    %v830 = vpop.f32.mrf.mxu0
    %831 = vdwg.mxu0
    %v833 = vrot.slane %v829, 1
    %v836 = vadd.f32 %v754, %v829
    %v837 = vadd.f32 %v755, %v833
    %v838 = vxor.u32 %v836, 2147483648
    %v839 = vxor.u32 %v837, 2147483648
    %v840 = vmul.f32 %v838, 1.442695
    %v841 = vpow.pop %v840
    %v842 = vmul.f32 %v839, 1.442695
    %v843 = vpow.pop %v842
    %v844 = vadd.f32 %v841, 1.0
    %v845 = vadd.f32 %v843, 1.0
    %v846 = vrcp.pop %v844
    %v847 = vmul.f32 1.0, %v846
    %v848 = vrcp.pop %v845
    %v849 = vmul.f32 1.0, %v848
    %v850 = vtanh.pop %v836
    %v851 = vtanh.pop %v837
    %v852 = vmul.f32 %v847, %v730
    %v853 = vmul.f32 %v849, %v731
    %856 = vrot.lane.b32.xlu0 %v850, 64
    %v857 = vpop.permute.xlu0 %856
    %858 = vrot.lane.b32.xlu0 %v851, 64
    %v859 = vpop.permute.xlu0 %858
    %v862 = vmul.f32 %v847, %v857
    %v863 = vmul.f32 %v849, %v859
    %866 = vrot.lane.b32.xlu0 %v862, 32
    %v867 = vpop.permute.xlu0 %866
    %868 = vrot.lane.b32.xlu0 %v863, 32
    %v869 = vpop.permute.xlu0 %868
    %v872 = vadd.f32 %v852, %v867
    %v873 = vadd.f32 %v853, %v869
    %v874 = vtanh.pop %v872
    %v875 = vtanh.pop %v873
    %878 = vrot.lane.b32.xlu0 %v874, 64
    %v879 = vpop.permute.xlu0 %878
    %880 = vrot.lane.b32.xlu0 %v875, 64
    %v881 = vpop.permute.xlu0 %880
    %v884 = vmul.f32 %v847, %v879
    %v885 = vmul.f32 %v849, %v881
    %888 = vrot.lane.b32.xlu0 %v884, 32
    %v889 = vpop.permute.xlu0 %888
    %890 = vrot.lane.b32.xlu0 %v885, 32
    %v891 = vpop.permute.xlu0 %890
    %894 = vst.msk [vmem:[#allocation7 + $0x5] sm:$0x1] %vm182, %v889
    %895 = vst.msk [vmem:[#allocation7 + $0xd] sm:$0x1] %vm182, %v891
    %v896 = vld [vmem:[#allocation2 + $0x6] sm:$0x1]
    %v897 = vld [vmem:[#allocation2 + $0xe] sm:$0x1]
    %v898 = vrot.slane %v885, 7
    %v899 = vsel %vm188, %v898, %v884
    %900 = vrot.lane.b32.xlu0 %v899, 32
    %v901 = vpop.permute.xlu0 %900
    %v902 = vsel %vm46, %v901, 0
    %904 = vmatprep.subr.mxu0 0.0
    %905 = vmatpush1.msra.mxu0 0.0
    %906 = vmatprep.subr.mxu0 0.0
    %907 = vmatpush1.msra.mxu0 0.0
    %908 = vmatprep.subr.mxu0 0.0
    %909 = vmatpush1.msra.mxu0 0.0
    %910 = vmatprep.subr.mxu0 0.0
    %911 = vmatpush1.msra.mxu0 0.0
    %912 = vmatprep.subr.mxu0 0.0
    %913 = vmatpush1.msra.mxu0 0.0
    %914 = vmatprep.subr.mxu0 0.0
    %915 = vmatpush1.msra.mxu0 0.0
    %916 = vmatprep.subr.mxu0 0.0
    %917 = vmatpush1.msra.mxu0 0.0
    %918 = vmatprep.subr.mxu0 0.0
    %919 = vmatpush1.msra.mxu0 0.0
    %920 = vmatprep.subr.mxu0 0.0
    %921 = vmatpush1.msra.mxu0 0.0
    %922 = vmatprep.subr.mxu0 0.0
    %923 = vmatpush1.msra.mxu0 0.0
    %924 = vmatprep.subr.mxu0 0.0
    %925 = vmatpush1.msra.mxu0 0.0
    %926 = vmatprep.subr.mxu0 0.0
    %927 = vmatpush1.msra.mxu0 0.0
    %928 = vmatprep.subr.mxu0 0.0
    %929 = vmatpush1.msra.mxu0 %v43
    %930 = vmatprep.subr.mxu0 0.0
    %931 = vmatpush1.msra.mxu0 %v42
    %932 = vmatprep.subr.mxu0 0.0
    %933 = vmatpush1.msra.mxu0 %v41
    %934 = vmatprep.subr.mxu0 0.0
    %935 = vmatpush1.msra.mxu0 %v40
    %936 = vmatprep.subr.mxu0 0.0
    %937 = vmatpush2.msra.mxu0 0.0
    %938 = vmatprep.subr.mxu0 0.0
    %939 = vmatpush2.msra.mxu0 0.0
    %940 = vmatprep.subr.mxu0 0.0
    %941 = vmatpush2.msra.mxu0 0.0
    %942 = vmatprep.subr.mxu0 0.0
    %943 = vmatpush2.msra.mxu0 0.0
    %944 = vmatprep.subr.mxu0 0.0
    %945 = vmatpush2.msra.mxu0 0.0
    %946 = vmatprep.subr.mxu0 0.0
    %947 = vmatpush2.msra.mxu0 0.0
    %948 = vmatprep.subr.mxu0 0.0
    %949 = vmatpush2.msra.mxu0 0.0
    %950 = vmatprep.subr.mxu0 0.0
    %951 = vmatpush2.msra.mxu0 0.0
    %952 = vmatprep.subr.mxu0 0.0
    %953 = vmatpush2.msra.mxu0 0.0
    %954 = vmatprep.subr.mxu0 0.0
    %955 = vmatpush2.msra.mxu0 0.0
    %956 = vmatprep.subr.mxu0 0.0
    %957 = vmatpush2.msra.mxu0 0.0
    %958 = vmatprep.subr.mxu0 0.0
    %959 = vmatpush2.msra.mxu0 0.0
    %960 = vmatprep.subr.mxu0 0.0
    %961 = vmatpush2.msra.mxu0 0.0
    %962 = vmatprep.subr.mxu0 0.0
    %963 = vmatpush2.msra.mxu0 0.0
    %964 = vmatprep.subr.mxu0 0.0
    %965 = vmatpush2.msra.mxu0 0.0
    %966 = vmatprep.subr.mxu0 0.0
    %967 = vmatpush2.msra.mxu0 0.0
    %968 = vmatprep.mubr.f32.mxu0 0.0
    %969 = vmatmul.mubr.f32.gmra.mxu0 %v902
    %v970 = vpop.f32.mrf.mxu0
    %v971 = vadd.f32 0.0, %v970
    %v972 = vpop.f32.mrf.mxu0
    %973 = vdwg.mxu0
    %v975 = vrot.slane %v971, 1
    %v978 = vadd.f32 %v896, %v971
    %v979 = vadd.f32 %v897, %v975
    %v980 = vxor.u32 %v978, 2147483648
    %v981 = vxor.u32 %v979, 2147483648
    %v982 = vmul.f32 %v980, 1.442695
    %v983 = vpow.pop %v982
    %v984 = vmul.f32 %v981, 1.442695
    %v985 = vpow.pop %v984
    %v986 = vadd.f32 %v983, 1.0
    %v987 = vadd.f32 %v985, 1.0
    %v988 = vrcp.pop %v986
    %v989 = vmul.f32 1.0, %v988
    %v990 = vrcp.pop %v987
    %v991 = vmul.f32 1.0, %v990
    %v992 = vtanh.pop %v978
    %v993 = vtanh.pop %v979
    %v994 = vmul.f32 %v989, %v872
    %v995 = vmul.f32 %v991, %v873
    %998 = vrot.lane.b32.xlu0 %v992, 64
    %v999 = vpop.permute.xlu0 %998
    %1000 = vrot.lane.b32.xlu0 %v993, 64
    %v1001 = vpop.permute.xlu0 %1000
    %v1004 = vmul.f32 %v989, %v999
    %v1005 = vmul.f32 %v991, %v1001
    %1008 = vrot.lane.b32.xlu0 %v1004, 32
    %v1009 = vpop.permute.xlu0 %1008
    %1010 = vrot.lane.b32.xlu0 %v1005, 32
    %v1011 = vpop.permute.xlu0 %1010
    %v1014 = vadd.f32 %v994, %v1009
    %v1015 = vadd.f32 %v995, %v1011
    %v1016 = vtanh.pop %v1014
    %v1017 = vtanh.pop %v1015
    %1020 = vrot.lane.b32.xlu0 %v1016, 64
    %v1021 = vpop.permute.xlu0 %1020
    %1022 = vrot.lane.b32.xlu0 %v1017, 64
    %v1023 = vpop.permute.xlu0 %1022
    %v1026 = vmul.f32 %v989, %v1021
    %v1027 = vmul.f32 %v991, %v1023
    %1030 = vrot.lane.b32.xlu0 %v1026, 32
    %v1031 = vpop.permute.xlu0 %1030
    %1032 = vrot.lane.b32.xlu0 %v1027, 32
    %v1033 = vpop.permute.xlu0 %1032
    %1036 = vst.msk [vmem:[#allocation7 + $0x6] sm:$0x1] %vm182, %v1031
    %1037 = vst.msk [vmem:[#allocation7 + $0xe] sm:$0x1] %vm182, %v1033
    %v1038 = vld [vmem:[#allocation2 + $0x7] sm:$0x1]
    %v1039 = vld [vmem:[#allocation2 + $0xf] sm:$0x1]
    %v1040 = vrot.slane %v1027, 7
    %v1041 = vsel %vm188, %v1040, %v1026
    %1042 = vrot.lane.b32.xlu0 %v1041, 32
    %v1043 = vpop.permute.xlu0 %1042
    %v1044 = vsel %vm46, %v1043, 0
    %1046 = vmatprep.subr.mxu0 0.0
    %1047 = vmatpush1.msra.mxu0 0.0
    %1048 = vmatprep.subr.mxu0 0.0
    %1049 = vmatpush1.msra.mxu0 0.0
    %1050 = vmatprep.subr.mxu0 0.0
    %1051 = vmatpush1.msra.mxu0 0.0
    %1052 = vmatprep.subr.mxu0 0.0
    %1053 = vmatpush1.msra.mxu0 0.0
    %1054 = vmatprep.subr.mxu0 0.0
    %1055 = vmatpush1.msra.mxu0 0.0
    %1056 = vmatprep.subr.mxu0 0.0
    %1057 = vmatpush1.msra.mxu0 0.0
    %1058 = vmatprep.subr.mxu0 0.0
    %1059 = vmatpush1.msra.mxu0 0.0
    %1060 = vmatprep.subr.mxu0 0.0
    %1061 = vmatpush1.msra.mxu0 0.0
    %1062 = vmatprep.subr.mxu0 0.0
    %1063 = vmatpush1.msra.mxu0 0.0
    %1064 = vmatprep.subr.mxu0 0.0
    %1065 = vmatpush1.msra.mxu0 0.0
    %1066 = vmatprep.subr.mxu0 0.0
    %1067 = vmatpush1.msra.mxu0 0.0
    %1068 = vmatprep.subr.mxu0 0.0
    %1069 = vmatpush1.msra.mxu0 0.0
    %1070 = vmatprep.subr.mxu0 0.0
    %1071 = vmatpush1.msra.mxu0 %v43
    %1072 = vmatprep.subr.mxu0 0.0
    %1073 = vmatpush1.msra.mxu0 %v42
    %1074 = vmatprep.subr.mxu0 0.0
    %1075 = vmatpush1.msra.mxu0 %v41
    %1076 = vmatprep.subr.mxu0 0.0
    %1077 = vmatpush1.msra.mxu0 %v40
    %1078 = vmatprep.subr.mxu0 0.0
    %1079 = vmatpush2.msra.mxu0 0.0
    %1080 = vmatprep.subr.mxu0 0.0
    %1081 = vmatpush2.msra.mxu0 0.0
    %1082 = vmatprep.subr.mxu0 0.0
    %1083 = vmatpush2.msra.mxu0 0.0
    %1084 = vmatprep.subr.mxu0 0.0
    %1085 = vmatpush2.msra.mxu0 0.0
    %1086 = vmatprep.subr.mxu0 0.0
    %1087 = vmatpush2.msra.mxu0 0.0
    %1088 = vmatprep.subr.mxu0 0.0
    %1089 = vmatpush2.msra.mxu0 0.0
    %1090 = vmatprep.subr.mxu0 0.0
    %1091 = vmatpush2.msra.mxu0 0.0
    %1092 = vmatprep.subr.mxu0 0.0
    %1093 = vmatpush2.msra.mxu0 0.0
    %1094 = vmatprep.subr.mxu0 0.0
    %1095 = vmatpush2.msra.mxu0 0.0
    %1096 = vmatprep.subr.mxu0 0.0
    %1097 = vmatpush2.msra.mxu0 0.0
    %1098 = vmatprep.subr.mxu0 0.0
    %1099 = vmatpush2.msra.mxu0 0.0
    %1100 = vmatprep.subr.mxu0 0.0
    %1101 = vmatpush2.msra.mxu0 0.0
    %1102 = vmatprep.subr.mxu0 0.0
    %1103 = vmatpush2.msra.mxu0 0.0
    %1104 = vmatprep.subr.mxu0 0.0
    %1105 = vmatpush2.msra.mxu0 0.0
    %1106 = vmatprep.subr.mxu0 0.0
    %1107 = vmatpush2.msra.mxu0 0.0
    %1108 = vmatprep.subr.mxu0 0.0
    %1109 = vmatpush2.msra.mxu0 0.0
    %1110 = vmatprep.mubr.f32.mxu0 0.0
    %1111 = vmatmul.mubr.f32.gmra.mxu0 %v1044
    %v1112 = vpop.f32.mrf.mxu0
    %v1113 = vadd.f32 0.0, %v1112
    %v1114 = vpop.f32.mrf.mxu0
    %1115 = vdwg.mxu0
    %v1117 = vrot.slane %v1113, 1
    %v1120 = vadd.f32 %v1038, %v1113
    %v1121 = vadd.f32 %v1039, %v1117
    %v1122 = vxor.u32 %v1120, 2147483648
    %v1123 = vxor.u32 %v1121, 2147483648
    %v1124 = vmul.f32 %v1122, 1.442695
    %v1125 = vpow.pop %v1124
    %v1126 = vmul.f32 %v1123, 1.442695
    %v1127 = vpow.pop %v1126
    %v1128 = vadd.f32 %v1125, 1.0
    %v1129 = vadd.f32 %v1127, 1.0
    %v1130 = vrcp.pop %v1128
    %v1131 = vmul.f32 1.0, %v1130
    %v1132 = vrcp.pop %v1129
    %v1133 = vmul.f32 1.0, %v1132
    %v1134 = vtanh.pop %v1120
    %v1135 = vtanh.pop %v1121
    %v1136 = vmul.f32 %v1131, %v1014
    %v1137 = vmul.f32 %v1133, %v1015
    %1140 = vrot.lane.b32.xlu0 %v1134, 64
    %v1141 = vpop.permute.xlu0 %1140
    %1142 = vrot.lane.b32.xlu0 %v1135, 64
    %v1143 = vpop.permute.xlu0 %1142
    %v1146 = vmul.f32 %v1131, %v1141
    %v1147 = vmul.f32 %v1133, %v1143
    %1150 = vrot.lane.b32.xlu0 %v1146, 32
    %v1151 = vpop.permute.xlu0 %1150
    %1152 = vrot.lane.b32.xlu0 %v1147, 32
    %v1153 = vpop.permute.xlu0 %1152
    %v1156 = vadd.f32 %v1136, %v1151
    %v1157 = vadd.f32 %v1137, %v1153
    %v1158 = vtanh.pop %v1156
    %v1159 = vtanh.pop %v1157
    %1162 = vrot.lane.b32.xlu0 %v1158, 64
    %v1163 = vpop.permute.xlu0 %1162
    %1164 = vrot.lane.b32.xlu0 %v1159, 64
    %v1165 = vpop.permute.xlu0 %1164
    %v1168 = vmul.f32 %v1131, %v1163
    %v1169 = vmul.f32 %v1133, %v1165
    %1172 = vrot.lane.b32.xlu0 %v1168, 32
    %v1173 = vpop.permute.xlu0 %1172
    %1174 = vrot.lane.b32.xlu0 %v1169, 32
    %v1175 = vpop.permute.xlu0 %1174
    %1178 = vst.msk [vmem:[#allocation7 + $0x7] sm:$0x1] %vm182, %v1173
    %1179 = vst.msk [vmem:[#allocation7 + $0xf] sm:$0x1] %vm182, %v1175
    // Predicated region
    $region18: #{tpu_custom_call.1} parent=1 // pred_check
      _
    $region19: #{tpu_custom_call.1} parent=1 // pred_check_branch
      %1181 = sbr.rel (0) target = $region21
    $region20: #{tpu_custom_call.1} parent=1 // pred_region
      %s1183 = ssub.s32 256, 256
      %1184 = vsyncadd [#allocation4], %s1183
      %s1185 = sshll.u32 [#allocation7], 4
      %s1186 = int_to_ptr.vmem [resolvable:$true] %s1185
      %1191 = dma.vmem_to_hbm [thread:$0]  %s1186, 256, %s2, [#allocation4], 128, 128, 8
    $region21: #{tpu_custom_call.1} parent=1 // pred_fallthru
      _
    // Predicated region
    $region22: #{tpu_custom_call.1} parent=1 // pred_check
      _
    $region23: #{tpu_custom_call.1} parent=1 // pred_check_branch
      %1193 = sbr.rel (0) target = $region25
    $region24: #{tpu_custom_call.1} parent=1 // pred_region
      %1194 = dma.done [#allocation4], 256
    $region25: #{tpu_custom_call.1} parent=1 // pred_fallthru
      _
    %1195 = vsyncpa [#allocation3], 1
    %1196 = vsyncpa [#allocation6], 1
    %1197 = vsyncpa [#allocation4], 1

</llo_original>
